<compile_context>
chip_gen: v6e
topology: v6e:2x2x1
jax: 0.10.0
libtpu: 0.0.40
codegen_flags: <defaults>
</compile_context>

<pallas_src>
import math

import jax
import jax.numpy as jnp
from jax.experimental import pallas as pl
from jax.experimental.pallas import tpu as pltpu

_LANE_CANDIDATES = (2048, 1024, 512, 256, 128)   # lane-dense widths (multiples of 128)
_TILE_BYTES = 4 * 1024 * 1024                    # per-operand tile target (~4 MiB)
_SMALL_BYTES = 2 * 1024 * 1024                   # below this, let XLA fuse the add


def _add_kernel(a_ref, b_ref, o_ref):
    o_ref[...] = a_ref[...] + b_ref[...]


def _sublane_multiple(dtype) -> int:
    itemsize = jnp.dtype(dtype).itemsize
    return max(8, 32 // itemsize)  # 8 (f32/i32), 16 (bf16), 32 (int8/fp8)


def _round_up(x: int, m: int) -> int:
    return ((x + m - 1) // m) * m


def pallas_add(x410: jax.Array, x396: jax.Array, *, force_pallas: bool = False) -> jax.Array:
    assert x410.shape == x396.shape and x410.dtype == x396.dtype
    orig_shape = x410.shape
    dtype = x410.dtype
    itemsize = jnp.dtype(dtype).itemsize
    total = math.prod(orig_shape)
    nbytes = total * itemsize

    # Largest lane-dense width that divides the flat size -> zero-copy reshape.
    lanes = next((l for l in _LANE_CANDIDATES if total % l == 0), None)

    # Dispatch: fall back to the fused XLA add when padding would be required
    # (no zero-copy factorization) or when the tensor is tiny and launch
    # overhead would dominate.
    if lanes is None or (not force_pallas and nbytes < _SMALL_BYTES):
        return x410 + x396

    rows = total // lanes
    sub = _sublane_multiple(dtype)

    # Tile height: <= ~4 MiB per operand, multiple of the sublane count, and
    # capped at ~half the rows so the grid has >= 2 steps (v7x megacore).
    max_tm = max(sub, (_TILE_BYTES // (lanes * itemsize)) // sub * sub)
    half_rows = _round_up(pl.cdiv(rows, 2), sub)
    tm = min(max_tm, max(sub, half_rows))
    grid = pl.cdiv(rows, tm)   # ragged last block is masked by the pipeline

    a2 = x410.reshape(rows, lanes)   # contiguous -> pure bitcast, no HBM traffic
    b2 = x396.reshape(rows, lanes)

    block = pl.BlockSpec((tm, lanes), lambda i: (i, 0))

    tile_bytes = tm * lanes * itemsize
    # 3 operands x 2 buffers = 6 tiles live, plus ~2 tiles headroom; floor at
    # the 16 MiB v5e default so small tiles never under-provision.
    vmem_limit = min(100 * 1024 * 1024, max(16 * 1024 * 1024, 8 * tile_bytes))

    out2 = pl.pallas_call(
        _add_kernel,
        out_shape=jax.ShapeDtypeStruct((rows, lanes), dtype),
        grid=(grid,),
        in_specs=[block, block],
        out_specs=block,
        compiler_params=pltpu.CompilerParams(
            dimension_semantics=("parallel",),   # megacore sharding on v7x
            vmem_limit_bytes=vmem_limit,
        ),
        cost_estimate=pl.CostEstimate(
            flops=total, transcendentals=0, bytes_accessed=3 * nbytes),
    )(a2, b2)

    return out2.reshape(orig_shape)


if __name__ == "__main__":
    key = jax.random.PRNGKey(0)
    k1, k2 = jax.random.split(key)
    # Shapes taken directly from the module spec: NCHW [1, 160, 14, 14].
    # (160*14*14 = 31360 is a multiple of 128, so the zero-copy Pallas path is hit.)
    x410 = jax.random.normal(k1, (1, 160, 14, 14), dtype=jnp.float32)
    x396 = jax.random.normal(k2, (1, 160, 14, 14), dtype=jnp.float32)

    # Force the Pallas path so the kernel itself is compiled and run
    # (production dispatch would use the fused XLA add for a tensor this small).
    out = pallas_add(x410, x396, force_pallas=True)
    jax.block_until_ready(out)

    ref = x410 + x396
    assert out.shape == ref.shape and out.dtype == ref.dtype
    # Same-dtype f32 add is bit-exact.
    assert bool(jnp.all(out == ref)), "mismatch vs reference"

    print("KERNEL_OK")
</pallas_src>

<mosaic_0001>
module attributes {stable_mosaic.version = 11 : i64} {
  func.func @_add_kernel(%arg0: i32, %arg1: memref<128x128xf32, #tpu.memory_space<vmem>>, %arg2: memref<128x128xf32, #tpu.memory_space<vmem>>, %arg3: memref<128x128xf32, #tpu.memory_space<vmem>>) attributes {dimension_semantics = [#tpu.dimension_semantics<parallel>], iteration_bounds = array<i64: 2>, scalar_prefetch = 0 : i64, scratch_operands = 0 : i64, tpu.core_type = #tpu.core_type<tc>, window_params = [{transform_indices = @transform_0, window_bounds = array<i64: 128, 128>}, {transform_indices = @transform_1, window_bounds = array<i64: 128, 128>}, {transform_indices = @transform_2, window_bounds = array<i64: 128, 128>}]} {
    %c0 = arith.constant 0 : index
    %c0_0 = arith.constant 0 : index
    %0 = vector.load %arg1[%c0, %c0_0] : memref<128x128xf32, #tpu.memory_space<vmem>>, vector<128x128xf32>
    %c0_1 = arith.constant 0 : index
    %c0_2 = arith.constant 0 : index
    %1 = vector.load %arg2[%c0_1, %c0_2] : memref<128x128xf32, #tpu.memory_space<vmem>>, vector<128x128xf32>
    %2 = arith.addf %0, %1 : vector<128x128xf32>
    %c0_3 = arith.constant 0 : index
    %c0_4 = arith.constant 0 : index
    %3 = vector.load %arg3[%c0_3, %c0_4] : memref<128x128xf32, #tpu.memory_space<vmem>>, vector<128x128xf32>
    tpu.vector_store %arg3[%c0_3, %c0_4], %2 {strides = array<i32>} : memref<128x128xf32, #tpu.memory_space<vmem>>, vector<128x128xf32>,
    return
  }
  func.func @transform_0(%arg0: i32) -> (i32, i32) {
    %c0_i32 = arith.constant 0 : i32
    %c0_i32_0 = arith.constant 0 : i32
    return %arg0, %c0_i32 : i32, i32
  }
  func.func @transform_1(%arg0: i32) -> (i32, i32) {
    %c0_i32 = arith.constant 0 : i32
    %c0_i32_0 = arith.constant 0 : i32
    return %arg0, %c0_i32 : i32, i32
  }
  func.func @transform_2(%arg0: i32) -> (i32, i32) {
    %c0_i32 = arith.constant 0 : i32
    %c0_i32_0 = arith.constant 0 : i32
    return %arg0, %c0_i32 : i32, i32
  }
}

</mosaic_0001>

<llo_original>
// kernel: tpu_custom_call.1
$region0: #{tpu_custom_call.1}
  #allocation0 [shape = 'u32[]', space=smem, size = 0x4, offset = 0x4, fixed_abs, tag = 'smem constant byte address 0x4 - core index']
  #allocation1 [shape = 'u32[144,128]{1,0:T(1,128)}', space=vmem, size = 0x12000, scoped, tag = 'internal scratch']
  %s0 = inlined_call_operand.hbm [shape: f32[245,128], index: 0, kind: input, shape index: {}]
  %s1 = inlined_call_operand.hbm [shape: f32[245,128], index: 1, kind: input, shape index: {}]
  %s2 = inlined_call_operand.hbm [shape: f32[245,128], index: 2, kind: output, shape index: {}]
  %s3 = sld [smem:[#allocation0]]
  $region49: #{tpu_custom_call.1} parent=0
    _
  %s5 = ssub.s32 1, %s3
  %s6 = scalar_select 0, %s5, %s3
  $region1: #{tpu_custom_call.1} parent=0
    #allocation2 [shape = 'u8[131072]{0}', space=vmem, size = 0x20000, scoped, tag = 'input window, operand 0']
    #allocation3 [shape = 's32[2]{0}', space=sflag, size = 0x8, scoped, tag = 'scoped memory for tpu_custom_call.1']
    #allocation4 [shape = 's32[2]{0}', space=sflag, size = 0x8, scoped, tag = 'scoped memory for tpu_custom_call.1']
    #allocation5 [shape = 'u8[131072]{0}', space=vmem, size = 0x20000, scoped, tag = 'input window, operand 1']
    #allocation6 [shape = 's32[2]{0}', space=sflag, size = 0x8, scoped, tag = 'scoped memory for tpu_custom_call.1']
    #allocation7 [shape = 'u8[131072]{0}', space=vmem, size = 0x20000, scoped, tag = 'output window, operand 0']
    %7 = vsyncpa [#allocation3], 0
    %s8 = scalar_lea.sflag [#allocation3], 1
    %9 = vsyncpa %s8, 0
    %10 = vsyncpa [#allocation6], 0
    %s11 = scalar_lea.sflag [#allocation6], 1
    %12 = vsyncpa %s11, 0
    %13 = vsyncpa [#allocation4], 0
    %s14 = scalar_lea.sflag [#allocation4], 1
    %15 = vsyncpa %s14, 0
    loop: start=0, step=1, limit=4
    $region2: #{tpu_custom_call.1} parent=1 // loop_pre_header
      _
    $region3: #{tpu_custom_call.1} parent=1 // loop_header
      %s17 = sphi 0, %s21
      %p18 = scmp.ge.s32.totalorder %s17, 4
      %s27 = sphi 0, %s29
      %s30 = sphi 0, %s27
      %s31 = sphi 0, %s30
      %s47 = sphi 0, %s31
      %s53 = sphi 0, %s55
      %s56 = sphi 0, %s53
      %s57 = sphi 0, %s56
      %s73 = sphi 0, %s57
      %s79 = sphi 0, %s81
      %s82 = sphi 0, %s79
      %s83 = sphi 0, %s82
      %s99 = sphi 0, %s83
    $region4: #{tpu_custom_call.1} parent=1 // loop_header_branch
      %20 = sbr.rel (%p18) target = $region8
    $region5: #{tpu_custom_call.1} parent=1 // loop_body
      %s22 = ssub.s32 %s17, 1
      %s23 = ssub.s32 %s17, 2
      %s24 = sadd.s32 %s17, 1
      %s25 = ssub.s32 %s17, %s24
      %p26 = scmp.eq.s32.totalorder %s25, 0
      %s28 = sadd.s32 %s27, 1
      %s29 = scalar_select %p26, %s27, %s28
      %p32 = pneg %p26
      %p33 = scmp.eq.s32.totalorder %s17, 1
      %p34 = por %p32, %p33
      %p35 = scmp.ne.s32.totalorder %s27, %s30
      %p36 = scmp.eq.s32.totalorder %s17, 0
      %p37 = por %p35, %p36
      %p38 = scmp.ne.s32.totalorder %s27, %s30
      %p39 = scmp.eq.s32.totalorder %s22, 1
      %p40 = por %p38, %p39
      %p41 = scmp.ne.s32.totalorder %s30, %s31
      %p42 = scmp.eq.s32.totalorder %s22, 0
      %p43 = por %p41, %p42
      %p44 = scmp.ne.s32.totalorder %s30, %s31
      %p45 = scmp.eq.s32.totalorder %s23, 1
      %p46 = por %p44, %p45
      %p48 = scmp.ne.s32.totalorder %s31, %s47
      %p49 = scmp.eq.s32.totalorder %s23, 0
      %p50 = por %p48, %p49
      %s51 = ssub.s32 %s17, %s24
      %p52 = scmp.eq.s32.totalorder %s51, 0
      %s54 = sadd.s32 %s53, 1
      %s55 = scalar_select %p52, %s53, %s54
      %p58 = pneg %p52
      %p59 = scmp.eq.s32.totalorder %s17, 1
      %p60 = por %p58, %p59
      %p61 = scmp.ne.s32.totalorder %s53, %s56
      %p62 = scmp.eq.s32.totalorder %s17, 0
      %p63 = por %p61, %p62
      %p64 = scmp.ne.s32.totalorder %s53, %s56
      %p65 = scmp.eq.s32.totalorder %s22, 1
      %p66 = por %p64, %p65
      %p67 = scmp.ne.s32.totalorder %s56, %s57
      %p68 = scmp.eq.s32.totalorder %s22, 0
      %p69 = por %p67, %p68
      %p70 = scmp.ne.s32.totalorder %s56, %s57
      %p71 = scmp.eq.s32.totalorder %s23, 1
      %p72 = por %p70, %p71
      %p74 = scmp.ne.s32.totalorder %s57, %s73
      %p75 = scmp.eq.s32.totalorder %s23, 0
      %p76 = por %p74, %p75
      %s77 = ssub.s32 %s17, %s24
      %p78 = scmp.eq.s32.totalorder %s77, 0
      %s80 = sadd.s32 %s79, 1
      %s81 = scalar_select %p78, %s79, %s80
      %p84 = pneg %p78
      %p85 = scmp.eq.s32.totalorder %s17, 1
      %p86 = por %p84, %p85
      %p87 = scmp.ne.s32.totalorder %s79, %s82
      %p88 = scmp.eq.s32.totalorder %s17, 0
      %p89 = por %p87, %p88
      %p90 = scmp.ne.s32.totalorder %s79, %s82
      %p91 = scmp.eq.s32.totalorder %s22, 1
      %p92 = por %p90, %p91
      %p93 = scmp.ne.s32.totalorder %s82, %s83
      %p94 = scmp.eq.s32.totalorder %s22, 0
      %p95 = por %p93, %p94
      %p96 = scmp.ne.s32.totalorder %s82, %s83
      %p97 = scmp.eq.s32.totalorder %s23, 1
      %p98 = por %p96, %p97
      %p100 = scmp.ne.s32.totalorder %s83, %s99
      %p101 = scmp.eq.s32.totalorder %s23, 0
      %p102 = por %p100, %p101
      %p103 = scmp.le.s32.totalorder 1, %s17
      %p104 = scmp.lt.s32.totalorder %s17, 3
      %p105 = pnand %p103, %p104
      %p106 = pneg %p105
      // Predicated region
      $region9: #{tpu_custom_call.1} parent=5 // pred_check
        _
      $region10: #{tpu_custom_call.1} parent=5 // pred_check_branch
        %108 = sbr.rel (%p105) target = $region12
      $region11: #{tpu_custom_call.1} parent=5 // pred_region
        %s109 = ssub.s32 %s17, 1
      $region12: #{tpu_custom_call.1} parent=5 // pred_fallthru
        _
      %p110 = scmp.lt.s32.totalorder %s17, 2
      // Predicated region
      $region13: #{tpu_custom_call.1} parent=5 // pred_check
        %p111 = pneg %p110
      $region14: #{tpu_custom_call.1} parent=5 // pred_check_branch
        %113 = sbr.rel (%p111) target = $region16
      $region15: #{tpu_custom_call.1} parent=5 // pred_region
        // Predicated region
        $region17: #{tpu_custom_call.1} parent=15 // pred_check
          %p114 = pneg %p37
        $region18: #{tpu_custom_call.1} parent=15 // pred_check_branch
          %116 = sbr.rel (%p114) target = $region20
        $region19: #{tpu_custom_call.1} parent=15 // pred_region
          %s117 = sand.u32 %s27, 1
          %s118 = scalar_lea.sflag [#allocation3], %s117
          %s119 = sand.u32 %s27, 1
          %s120 = smul.addr %s119, 128
          %s121 = scalar_lea.vmem [#allocation2], %s120
          %s122 = smul.u32 16, %s17
          %s123 = ssub.s32 31, %s122
          %p124 = scmp.lt.s32.totalorder %s123, 16
          %s125 = scalar_select %p124, %s123, 16
          %s126 = smul.u32 128, %s125
          %s128 = ssub.s32 2048, %s126
          %129 = vsyncadd %s118, %s128
          %p130 = scmp.ne.s32.totalorder 0, %s126
          %s131 = smul.addr %s122, 128
          %s132 = scalar_lea.hbm %s0, %s131
          %s133 = smul.u32 8, %s125
          %s134 = sshll.u32 %s121, 4
          %s135 = int_to_ptr.vmem [resolvable:$true] %s134
          %s136 = sshll.u32 %s133, 4
          %140 = dma.hbm_to_vmem [thread:$0]  (%p130), %s132, %s136, %s135, %s118, 128, 128, 8
        $region20: #{tpu_custom_call.1} parent=15 // pred_fallthru
          _
        // Predicated region
        $region21: #{tpu_custom_call.1} parent=15 // pred_check
          %p141 = pneg %p63
        $region22: #{tpu_custom_call.1} parent=15 // pred_check_branch
          %143 = sbr.rel (%p141) target = $region24
        $region23: #{tpu_custom_call.1} parent=15 // pred_region
          %s144 = sand.u32 %s53, 1
          %s145 = scalar_lea.sflag [#allocation6], %s144
          %s146 = sand.u32 %s53, 1
          %s147 = smul.addr %s146, 128
          %s148 = scalar_lea.vmem [#allocation5], %s147
          %s149 = smul.u32 16, %s17
          %s150 = ssub.s32 31, %s149
          %p151 = scmp.lt.s32.totalorder %s150, 16
          %s152 = scalar_select %p151, %s150, 16
          %s153 = smul.u32 128, %s152
          %s155 = ssub.s32 2048, %s153
          %156 = vsyncadd %s145, %s155
          %p157 = scmp.ne.s32.totalorder 0, %s153
          %s158 = smul.addr %s149, 128
          %s159 = scalar_lea.hbm %s1, %s158
          %s160 = smul.u32 8, %s152
          %s161 = sshll.u32 %s148, 4
          %s162 = int_to_ptr.vmem [resolvable:$true] %s161
          %s163 = sshll.u32 %s160, 4
          %167 = dma.hbm_to_vmem [thread:$0]  (%p157), %s159, %s163, %s162, %s145, 128, 128, 8
        $region24: #{tpu_custom_call.1} parent=15 // pred_fallthru
          _
      $region16: #{tpu_custom_call.1} parent=5 // pred_fallthru
        _
      %p168 = scmp.le.s32.totalorder 1, %s17
      %p169 = scmp.lt.s32.totalorder %s17, 3
      %p170 = pnand %p168, %p169
      %p171 = pneg %p170
      // Predicated region
      $region25: #{tpu_custom_call.1} parent=5 // pred_check
        _
      $region26: #{tpu_custom_call.1} parent=5 // pred_check_branch
        %173 = sbr.rel (%p170) target = $region28
      $region27: #{tpu_custom_call.1} parent=5 // pred_region
        %s174 = ssub.s32 %s17, 1
        %s175 = sand.u32 %s30, 1
        %s176 = scalar_lea.sflag [#allocation3], %s175
        %s177 = sand.u32 %s30, 1
        %s178 = smul.addr %s177, 128
        %s179 = scalar_lea.vmem [#allocation2], %s178
        // Predicated region
        $region29: #{tpu_custom_call.1} parent=27 // pred_check
          %p180 = pneg %p43
        $region30: #{tpu_custom_call.1} parent=27 // pred_check_branch
          %182 = sbr.rel (%p180) target = $region32
        $region31: #{tpu_custom_call.1} parent=27 // pred_region
          %183 = dma.done %s176, 2048
        $region32: #{tpu_custom_call.1} parent=27 // pred_fallthru
          _
        %s184 = sand.u32 %s56, 1
        %s185 = scalar_lea.sflag [#allocation6], %s184
        %s186 = sand.u32 %s56, 1
        %s187 = smul.addr %s186, 128
        %s188 = scalar_lea.vmem [#allocation5], %s187
        // Predicated region
        $region33: #{tpu_custom_call.1} parent=27 // pred_check
          %p189 = pneg %p69
        $region34: #{tpu_custom_call.1} parent=27 // pred_check_branch
          %191 = sbr.rel (%p189) target = $region36
        $region35: #{tpu_custom_call.1} parent=27 // pred_region
          %192 = dma.done %s185, 2048
        $region36: #{tpu_custom_call.1} parent=27 // pred_fallthru
          _
        %s193 = sand.u32 %s30, 1
        %s194 = scalar_lea.sflag [#allocation3], %s193
        %s195 = sand.u32 %s30, 1
        %s196 = smul.addr %s195, 128
        %s197 = scalar_lea.vmem [#allocation2], %s196
        %p198 = pneg %p43
        %p199 = pneg %p40
        %s200 = sand.u32 %s56, 1
        %s201 = scalar_lea.sflag [#allocation6], %s200
        %s202 = sand.u32 %s56, 1
        %s203 = smul.addr %s202, 128
        %s204 = scalar_lea.vmem [#allocation5], %s203
        %p205 = pneg %p69
        %p206 = pneg %p66
        %p207 = pneg %p95
        %p208 = pneg %p92
        %s209 = sand.u32 %s82, 1
        %s210 = scalar_lea.sflag [#allocation4], %s209
        %s211 = sand.u32 %s82, 1
        %s212 = smul.addr %s211, 128
        %s213 = scalar_lea.vmem [#allocation7], %s212
        %s214 = smul.u32 16, %s22
        %s215 = ssub.s32 31, %s214
        %p216 = scmp.lt.s32.totalorder %s215, 16
        %s217 = scalar_select %p216, %s215, 16
        %s218 = smul.u32 128, %s217
        %s219 = smul.u32 16, %s22
        %s220 = ssub.s32 31, %s219
        %p221 = scmp.lt.s32.totalorder %s220, 16
        %s222 = scalar_select %p221, %s220, 16
        %s223 = smul.u32 128, %s222
        %s224 = smul.u32 16, %s22
        %s225 = ssub.s32 31, %s224
        %p226 = scmp.lt.s32.totalorder %s225, 16
        %s227 = scalar_select %p226, %s225, 16
        %s228 = smul.u32 128, %s227
        %v229 = vld [vmem:[%s179] sm:$0xff]
        %v230 = vld [vmem:[%s179 + $0x8] sm:$0xff]
        %v231 = vld [vmem:[%s179 + $0x10] sm:$0xff]
        %v232 = vld [vmem:[%s179 + $0x18] sm:$0xff]
        %v233 = vld [vmem:[%s179 + $0x20] sm:$0xff]
        %v234 = vld [vmem:[%s179 + $0x28] sm:$0xff]
        %v235 = vld [vmem:[%s179 + $0x30] sm:$0xff]
        %v236 = vld [vmem:[%s179 + $0x38] sm:$0xff]
        %v237 = vld [vmem:[%s179 + $0x40] sm:$0xff]
        %v238 = vld [vmem:[%s179 + $0x48] sm:$0xff]
        %v239 = vld [vmem:[%s179 + $0x50] sm:$0xff]
        %v240 = vld [vmem:[%s179 + $0x58] sm:$0xff]
        %v241 = vld [vmem:[%s179 + $0x60] sm:$0xff]
        %v242 = vld [vmem:[%s179 + $0x68] sm:$0xff]
        %v243 = vld [vmem:[%s179 + $0x70] sm:$0xff]
        %v244 = vld [vmem:[%s179 + $0x78] sm:$0xff]
        %v245 = vld [vmem:[%s188] sm:$0xff]
        %v246 = vld [vmem:[%s188 + $0x8] sm:$0xff]
        %v247 = vld [vmem:[%s188 + $0x10] sm:$0xff]
        %v248 = vld [vmem:[%s188 + $0x18] sm:$0xff]
        %v249 = vld [vmem:[%s188 + $0x20] sm:$0xff]
        %v250 = vld [vmem:[%s188 + $0x28] sm:$0xff]
        %v251 = vld [vmem:[%s188 + $0x30] sm:$0xff]
        %v252 = vld [vmem:[%s188 + $0x38] sm:$0xff]
        %v253 = vld [vmem:[%s188 + $0x40] sm:$0xff]
        %v254 = vld [vmem:[%s188 + $0x48] sm:$0xff]
        %v255 = vld [vmem:[%s188 + $0x50] sm:$0xff]
        %v256 = vld [vmem:[%s188 + $0x58] sm:$0xff]
        %v257 = vld [vmem:[%s188 + $0x60] sm:$0xff]
        %v258 = vld [vmem:[%s188 + $0x68] sm:$0xff]
        %v259 = vld [vmem:[%s188 + $0x70] sm:$0xff]
        %v260 = vld [vmem:[%s188 + $0x78] sm:$0xff]
        %v261 = vadd.f32 %v229, %v245
        %v262 = vadd.f32 %v230, %v246
        %v263 = vadd.f32 %v231, %v247
        %v264 = vadd.f32 %v232, %v248
        %v265 = vadd.f32 %v233, %v249
        %v266 = vadd.f32 %v234, %v250
        %v267 = vadd.f32 %v235, %v251
        %v268 = vadd.f32 %v236, %v252
        %v269 = vadd.f32 %v237, %v253
        %v270 = vadd.f32 %v238, %v254
        %v271 = vadd.f32 %v239, %v255
        %v272 = vadd.f32 %v240, %v256
        %v273 = vadd.f32 %v241, %v257
        %v274 = vadd.f32 %v242, %v258
        %v275 = vadd.f32 %v243, %v259
        %v276 = vadd.f32 %v244, %v260
        %277 = vst [vmem:[%s213] sm:$0xff] %v261
        %278 = vst [vmem:[%s213 + $0x8] sm:$0xff] %v262
        %279 = vst [vmem:[%s213 + $0x10] sm:$0xff] %v263
        %280 = vst [vmem:[%s213 + $0x18] sm:$0xff] %v264
        %281 = vst [vmem:[%s213 + $0x20] sm:$0xff] %v265
        %282 = vst [vmem:[%s213 + $0x28] sm:$0xff] %v266
        %283 = vst [vmem:[%s213 + $0x30] sm:$0xff] %v267
        %284 = vst [vmem:[%s213 + $0x38] sm:$0xff] %v268
        %285 = vst [vmem:[%s213 + $0x40] sm:$0xff] %v269
        %286 = vst [vmem:[%s213 + $0x48] sm:$0xff] %v270
        %287 = vst [vmem:[%s213 + $0x50] sm:$0xff] %v271
        %288 = vst [vmem:[%s213 + $0x58] sm:$0xff] %v272
        %289 = vst [vmem:[%s213 + $0x60] sm:$0xff] %v273
        %290 = vst [vmem:[%s213 + $0x68] sm:$0xff] %v274
        %291 = vst [vmem:[%s213 + $0x70] sm:$0xff] %v275
        %292 = vst [vmem:[%s213 + $0x78] sm:$0xff] %v276
        %s293 = sand.u32 %s82, 1
        %s294 = scalar_lea.sflag [#allocation4], %s293
        %s295 = sand.u32 %s82, 1
        %s296 = smul.addr %s295, 128
        %s297 = scalar_lea.vmem [#allocation7], %s296
        // Predicated region
        $region37: #{tpu_custom_call.1} parent=27 // pred_check
          %p298 = pneg %p92
        $region38: #{tpu_custom_call.1} parent=27 // pred_check_branch
          %300 = sbr.rel (%p298) target = $region40
        $region39: #{tpu_custom_call.1} parent=27 // pred_region
          %s301 = smul.u32 16, %s22
          %s302 = ssub.s32 31, %s301
          %p303 = scmp.lt.s32.totalorder %s302, 16
          %s304 = scalar_select %p303, %s302, 16
          %s305 = smul.u32 128, %s304
          %s307 = ssub.s32 2048, %s305
          %308 = vsyncadd %s294, %s307
          %p309 = scmp.ne.s32.totalorder 0, %s305
          %s310 = smul.addr %s301, 128
          %s311 = scalar_lea.hbm %s2, %s310
          %s312 = smul.u32 8, %s304
          %s313 = sshll.u32 %s297, 4
          %s314 = int_to_ptr.vmem [resolvable:$true] %s313
          %s315 = sshll.u32 %s312, 4
          %319 = dma.vmem_to_hbm [thread:$0]  (%p309), %s314, %s315, %s311, %s294, 128, 128, 8
        $region40: #{tpu_custom_call.1} parent=27 // pred_fallthru
          _
      $region28: #{tpu_custom_call.1} parent=5 // pred_fallthru
        _
      %p320 = scmp.le.s32.totalorder 2, %s17
      // Predicated region
      $region41: #{tpu_custom_call.1} parent=5 // pred_check
        %p321 = pneg %p320
      $region42: #{tpu_custom_call.1} parent=5 // pred_check_branch
        %323 = sbr.rel (%p321) target = $region44
      $region43: #{tpu_custom_call.1} parent=5 // pred_region
        %s324 = ssub.s32 %s17, 2
        // Predicated region
        $region45: #{tpu_custom_call.1} parent=43 // pred_check
          %p325 = pneg %p98
        $region46: #{tpu_custom_call.1} parent=43 // pred_check_branch
          %327 = sbr.rel (%p325) target = $region48
        $region47: #{tpu_custom_call.1} parent=43 // pred_region
          %s328 = sand.u32 %s83, 1
          %s329 = scalar_lea.sflag [#allocation4], %s328
          %s330 = sand.u32 %s83, 1
          %s331 = smul.addr %s330, 128
          %s332 = scalar_lea.vmem [#allocation7], %s331
          %333 = dma.done %s329, 2048
        $region48: #{tpu_custom_call.1} parent=43 // pred_fallthru
          _
      $region44: #{tpu_custom_call.1} parent=5 // pred_fallthru
        _
    $region6: #{tpu_custom_call.1} parent=1 // loop_footer
      %s21 = sadd.s32 1, %s17
    $region7: #{tpu_custom_call.1} parent=1 // loop_footer_branch
      %16 = sbr.rel target = $region3
    $region8: #{tpu_custom_call.1} parent=1 // loop_exit
      _
    %334 = vsyncpa [#allocation3], 1
    %s335 = scalar_lea.sflag [#allocation3], 1
    %336 = vsyncpa %s335, 1
    %337 = vsyncpa [#allocation6], 1
    %s338 = scalar_lea.sflag [#allocation6], 1
    %339 = vsyncpa %s338, 1
    %340 = vsyncpa [#allocation4], 1
    %s341 = scalar_lea.sflag [#allocation4], 1
    %342 = vsyncpa %s341, 1

</llo_original>
